<compile_context>
chip_gen: v6e
topology: v6e:2x2x1
jax: 0.10.0
libtpu: 0.0.40
codegen_flags: <defaults>
</compile_context>

<pallas_src>
import functools

import jax
import jax.numpy as jnp
from jax import lax
from jax.experimental import pallas as pl
from jax.experimental.pallas import tpu as pltpu


# ----------------------------------------------------------------------------
# Single fused Pallas kernel: means + sQ covariance + affine map
# ----------------------------------------------------------------------------

def _lot_fused_kernel(xp_ref, xq_ref, o_ref, *, n_p, n_q, d, reg):
    xp = xp_ref[...]                                      # (Np, D)
    xq = xq_ref[...]                                      # (Nq, D)

    # ---- means (keepdims -> (1, D)) and centered copies ----
    mP = jnp.mean(xp, axis=0, keepdims=True)
    mQ = jnp.mean(xq, axis=0, keepdims=True)
    xpc = xp - mP
    xqc = xq - mQ

    # ---- reg * I built once from iota masks (no jnp.eye materialization) ----
    row = lax.broadcasted_iota(jnp.int32, (d, d), 0)
    col = lax.broadcasted_iota(jnp.int32, (d, d), 1)
    reg_eye = jnp.where(row == col, jnp.float32(reg), jnp.float32(0.0))

    # ---- sQ = cov(XQ.T) + reg*I  (divisor Nq-1); contraction on axis 0 of both
    #      operands feeds the MXU directly, no explicit transpose ----
    dn = (((0,), (0,)), ((), ()))
    sQ = lax.dot_general(xqc, xqc, dn, preferred_element_type=jnp.float32)
    sQ = sQ * jnp.float32(1.0 / (n_q - 1)) + reg_eye

    # ---- A collapses to sQ (sP^{+1/2} / sP^{-1/2} cancel in the module), so
    #      out = mQ + (XP - mP) @ sQ ----
    # TODO(synk): for large N, cast xpc/sQ to bf16 here (keep f32 accumulation) for
    # ~3x MXU throughput on the only N-scaled matmuls; validate against the reference.
    o_ref[...] = mQ + jnp.dot(xpc, sQ, preferred_element_type=jnp.float32)


# ----------------------------------------------------------------------------
# Wrapper
# ----------------------------------------------------------------------------

def lot_mapping_forward(XP, XQ, reg=1e-6):
    """Equivalent of LinearOptimalTransportMapping(reg).forward(XP, XQ) (unfitted)."""
    XP = jnp.asarray(XP, jnp.float32)
    XQ = jnp.asarray(XQ, jnp.float32)
    n_p, d = XP.shape
    n_q, d_q = XQ.shape
    assert d == d_q, "XP and XQ must have the same feature dimension"

    kernel = functools.partial(
        _lot_fused_kernel, n_p=n_p, n_q=n_q, d=d, reg=float(reg))

    # Grid-less call: everything fits VMEM at these shapes; untiled VMEM specs keep
    # each input single-buffered (no pipeline, no double-buffering).
    # TODO(synk): for large N, tile the sample axis with a grid ('arbitrary' on the
    # reduction axis) and an f32 (D,D) VMEM scratch accumulator for X^T X, keep XP
    # resident across the cov and map phases when N*D*4 fits the per-generation VMEM
    # budget (v6e: raise vmem_limit_bytes to ~48 MiB; v7x: ~half the v6e row tile,
    # <=48 MiB scoped; v5e: raise above the 16 MiB default — re-reading XP there
    # nearly doubles kernel time), and present a lane-dense (N*D/128, 128) output slab.
    return pl.pallas_call(
        kernel,
        out_shape=jax.ShapeDtypeStruct((n_p, d), jnp.float32),
        in_specs=[
            pl.BlockSpec(memory_space=pltpu.MemorySpace.VMEM),
            pl.BlockSpec(memory_space=pltpu.MemorySpace.VMEM),
        ],
        out_specs=pl.BlockSpec(memory_space=pltpu.MemorySpace.VMEM),
    )(XP, XQ)


# ----------------------------------------------------------------------------
# Pure-JAX reference (eigh-based, mirrors the torch module) for a sanity check
# ----------------------------------------------------------------------------

def _reference(XP, XQ, reg=1e-6):
    n_p, d = XP.shape
    n_q = XQ.shape[0]
    mP = jnp.mean(XP, axis=0, keepdims=True)
    mQ = jnp.mean(XQ, axis=0, keepdims=True)
    cP = XP - mP
    cQ = XQ - mQ
    sP = cP.T @ cP / (n_p - 1) + reg * jnp.eye(d)
    sQ = cQ.T @ cQ / (n_q - 1) + reg * jnp.eye(d)

    def mpow(mat, p):
        w, v = jnp.linalg.eigh(mat)
        w = jnp.maximum(w, 1e-30)          # guard against fp32 rounding negatives
        return (v * jnp.power(w, p)) @ v.T

    sP_pos = mpow(sP, 0.5)
    sP_neg = mpow(sP, -0.5)
    M = sP_pos @ sQ @ sP_pos
    A = sP_neg @ M @ sP_neg
    return mQ + (XP - mP) @ A


if __name__ == "__main__":
    key = jax.random.PRNGKey(0)
    kp, kq = jax.random.split(key)

    N, D = 64, 16
    XP = jax.random.normal(kp, (N, D), dtype=jnp.float32) * 1.5 + 0.3
    XQ = jax.random.normal(kq, (N, D), dtype=jnp.float32) * 0.7 - 0.2

    out = lot_mapping_forward(XP, XQ, reg=1e-6)
    out = jax.block_until_ready(out)
    assert out.shape == (N, D)

    # Sanity check against the eigh-based reference that mirrors the torch module.
    ref = _reference(XP, XQ, reg=1e-6)
    max_err = float(jnp.max(jnp.abs(out - ref)))
    assert jnp.allclose(out, ref, atol=1e-2, rtol=1e-2), (
        "mismatch: max abs err = %g" % max_err
    )

    print("KERNEL_OK")
</pallas_src>

<mosaic_0001>
module attributes {stable_mosaic.version = 11 : i64} {
  func.func @_lot_fused_kernel(%arg0: memref<64x16xf32, #tpu.memory_space<vmem>>, %arg1: memref<64x16xf32, #tpu.memory_space<vmem>>, %arg2: memref<64x16xf32, #tpu.memory_space<vmem>>) attributes {dimension_semantics = [], scalar_prefetch = 0 : i64, scratch_operands = 0 : i64, tpu.core_type = #tpu.core_type<tc>} {
    %c0 = arith.constant 0 : index
    %c0_0 = arith.constant 0 : index
    %0 = vector.load %arg0[%c0, %c0_0] : memref<64x16xf32, #tpu.memory_space<vmem>>, vector<64x16xf32>
    %c0_1 = arith.constant 0 : index
    %c0_2 = arith.constant 0 : index
    %1 = vector.load %arg1[%c0_1, %c0_2] : memref<64x16xf32, #tpu.memory_space<vmem>>, vector<64x16xf32>
    %cst = arith.constant dense<0.000000e+00> : vector<16xf32>
    %2 = vector.multi_reduction <add>, %0, %cst [0] : vector<64x16xf32> to vector<16xf32>
    %3 = vector.shape_cast %2 : vector<16xf32> to vector<1x16xf32>
    %cst_3 = arith.constant 6.400000e+01 : f32
    %4 = vector.broadcast %cst_3 : f32 to vector<1x16xf32>
    %5 = arith.divf %3, %4 : vector<1x16xf32>
    %cst_4 = arith.constant dense<0.000000e+00> : vector<16xf32>
    %6 = vector.multi_reduction <add>, %1, %cst_4 [0] : vector<64x16xf32> to vector<16xf32>
    %7 = vector.shape_cast %6 : vector<16xf32> to vector<1x16xf32>
    %cst_5 = arith.constant 6.400000e+01 : f32
    %8 = vector.broadcast %cst_5 : f32 to vector<1x16xf32>
    %9 = arith.divf %7, %8 : vector<1x16xf32>
    %10 = vector.broadcast %5 : vector<1x16xf32> to vector<64x16xf32>
    %11 = arith.subf %0, %10 : vector<64x16xf32>
    %12 = vector.broadcast %9 : vector<1x16xf32> to vector<64x16xf32>
    %13 = arith.subf %1, %12 : vector<64x16xf32>
    %14 = tpu.iota {dimensions = array<i32: 0>} : vector<16x16xi32>
    %15 = tpu.iota {dimensions = array<i32: 1>} : vector<16x16xi32>
    %16 = arith.cmpi eq, %14, %15 : vector<16x16xi32>
    %cst_6 = arith.constant 9.99999997E-7 : f32
    %cst_7 = arith.constant 0.000000e+00 : f32
    %17 = vector.broadcast %cst_6 : f32 to vector<16x16xf32>
    %18 = vector.broadcast %cst_7 : f32 to vector<16x16xf32>
    %19 = arith.select %16, %17, %18 : vector<16x16xi1>, vector<16x16xf32>
    %cst_8 = arith.constant dense<0.000000e+00> : vector<16x16xf32>
    %20 = tpu.matmul %13, %13, %cst_8 {dimension_numbers = #tpu.dot_dimension_numbers<[0], [0], [1], [1], [0, 1, 1, 1], [], []>} : vector<64x16xf32>, vector<64x16xf32>, vector<16x16xf32> -> vector<16x16xf32>
    %cst_9 = arith.constant 0.0158730168 : f32
    %21 = vector.broadcast %cst_9 : f32 to vector<16x16xf32>
    %22 = arith.mulf %20, %21 : vector<16x16xf32>
    %23 = arith.addf %22, %19 : vector<16x16xf32>
    %cst_10 = arith.constant dense<0.000000e+00> : vector<64x16xf32>
    %24 = tpu.matmul %11, %23, %cst_10 {dimension_numbers = #tpu.dot_dimension_numbers<[1], [0], [0], [1], [0, 0, 1, 1], [], []>} : vector<64x16xf32>, vector<16x16xf32>, vector<64x16xf32> -> vector<64x16xf32>
    %25 = vector.broadcast %9 : vector<1x16xf32> to vector<64x16xf32>
    %26 = arith.addf %25, %24 : vector<64x16xf32>
    %c0_11 = arith.constant 0 : index
    %c0_12 = arith.constant 0 : index
    %27 = vector.load %arg2[%c0_11, %c0_12] : memref<64x16xf32, #tpu.memory_space<vmem>>, vector<64x16xf32>
    tpu.vector_store %arg2[%c0_11, %c0_12], %26 {strides = array<i32>} : memref<64x16xf32, #tpu.memory_space<vmem>>, vector<64x16xf32>,
    return
  }
}

</mosaic_0001>

<llo_original>
// kernel: tpu_custom_call.1
$region0: #{tpu_custom_call.1}
  #allocation0 [shape = 'u32[]', space=smem, size = 0x4, offset = 0x4, fixed_abs, tag = 'smem constant byte address 0x4 - core index']
  #allocation1 [shape = 'u32[144,128]{1,0:T(1,128)}', space=vmem, size = 0x12000, scoped, tag = 'internal scratch']
  %s0 = inlined_call_operand.vmem [shape: f32[64,16], index: 0, kind: input, shape index: {}]
  %s1 = inlined_call_operand.vmem [shape: f32[64,16], index: 1, kind: input, shape index: {}]
  %s2 = inlined_call_operand.vmem [shape: f32[64,16], index: 2, kind: output, shape index: {}]
  %s3 = sld [smem:[#allocation0]]
  $region18: #{tpu_custom_call.1} parent=0
    _
  %s5 = ssub.s32 1, %s3
  %s6 = scalar_select 0, %s5, %s3
  // Predicated region
  $region2: #{tpu_custom_call.1} parent=0 // pred_check
    _
  $region3: #{tpu_custom_call.1} parent=0 // pred_check_branch
    %8 = sbr.rel (0) target = $region5
  $region4: #{tpu_custom_call.1} parent=0 // pred_region
    _
  $region5: #{tpu_custom_call.1} parent=0 // pred_fallthru
    _
  // Predicated region
  $region6: #{tpu_custom_call.1} parent=0 // pred_check
    _
  $region7: #{tpu_custom_call.1} parent=0 // pred_check_branch
    %10 = sbr.rel (0) target = $region9
  $region8: #{tpu_custom_call.1} parent=0 // pred_region
    _
  $region9: #{tpu_custom_call.1} parent=0 // pred_fallthru
    _
  %v11 = vld [vmem:[%s0] sm:$0xff]
  %v12 = vld [vmem:[%s0 + $0x8] sm:$0xff]
  %v13 = vld [vmem:[%s0 + $0x10] sm:$0xff]
  %v14 = vld [vmem:[%s0 + $0x18] sm:$0xff]
  %v15 = vld [vmem:[%s0 + $0x20] sm:$0xff]
  %v16 = vld [vmem:[%s0 + $0x28] sm:$0xff]
  %v17 = vld [vmem:[%s0 + $0x30] sm:$0xff]
  %v18 = vld [vmem:[%s0 + $0x38] sm:$0xff]
  %v19 = vld [vmem:[%s1] sm:$0xff]
  %v20 = vld [vmem:[%s1 + $0x8] sm:$0xff]
  %v21 = vld [vmem:[%s1 + $0x10] sm:$0xff]
  %v22 = vld [vmem:[%s1 + $0x18] sm:$0xff]
  %v23 = vld [vmem:[%s1 + $0x20] sm:$0xff]
  %v24 = vld [vmem:[%s1 + $0x28] sm:$0xff]
  %v25 = vld [vmem:[%s1 + $0x30] sm:$0xff]
  %v26 = vld [vmem:[%s1 + $0x38] sm:$0xff]
  %vm27 = vcmask 130048
  %v28 = vsel %vm27, %v11, 0.0
  %v29 = vsel %vm27, %v12, 0.0
  %v30 = vadd.f32 %v28, %v29
  %v31 = vsel %vm27, %v13, 0.0
  %v32 = vadd.f32 %v30, %v31
  %v33 = vsel %vm27, %v14, 0.0
  %v34 = vadd.f32 %v32, %v33
  %v35 = vsel %vm27, %v15, 0.0
  %v36 = vadd.f32 %v34, %v35
  %v37 = vsel %vm27, %v16, 0.0
  %v38 = vadd.f32 %v36, %v37
  %v39 = vsel %vm27, %v17, 0.0
  %v40 = vadd.f32 %v38, %v39
  %v41 = vsel %vm27, %v18, 0.0
  %v42 = vadd.f32 %v40, %v41
  %v43 = vrot.slane %v42, 4
  %v44 = vadd.f32 %v42, %v43
  %v45 = vrot.slane %v44, 2
  %v46 = vadd.f32 %v44, %v45
  %v47 = vrot.slane %v46, 1
  %v48 = vadd.f32 %v46, %v47
  %v49 = vrcp.pop 64.0
  %v50 = vmul.f32 %v48, %v49
  %v51 = vsel %vm27, %v19, 0.0
  %v52 = vsel %vm27, %v20, 0.0
  %v53 = vadd.f32 %v51, %v52
  %v54 = vsel %vm27, %v21, 0.0
  %v55 = vadd.f32 %v53, %v54
  %v56 = vsel %vm27, %v22, 0.0
  %v57 = vadd.f32 %v55, %v56
  %v58 = vsel %vm27, %v23, 0.0
  %v59 = vadd.f32 %v57, %v58
  %v60 = vsel %vm27, %v24, 0.0
  %v61 = vadd.f32 %v59, %v60
  %v62 = vsel %vm27, %v25, 0.0
  %v63 = vadd.f32 %v61, %v62
  %v64 = vsel %vm27, %v26, 0.0
  %v65 = vadd.f32 %v63, %v64
  %v66 = vrot.slane %v65, 4
  %v67 = vadd.f32 %v65, %v66
  %v68 = vrot.slane %v67, 2
  %v69 = vadd.f32 %v67, %v68
  %v70 = vrot.slane %v69, 1
  %v71 = vadd.f32 %v69, %v70
  %v72 = vmul.f32 %v71, %v49
  %v73 = vsub.f32 %v11, %v50
  %v74 = vsub.f32 %v12, %v50
  %v75 = vsub.f32 %v13, %v50
  %v76 = vsub.f32 %v14, %v50
  %v77 = vsub.f32 %v15, %v50
  %v78 = vsub.f32 %v16, %v50
  %v79 = vsub.f32 %v17, %v50
  %v80 = vsub.f32 %v18, %v50
  %v81 = vsub.f32 %v19, %v72
  %v82 = vsub.f32 %v20, %v72
  %v83 = vsub.f32 %v21, %v72
  %v84 = vsub.f32 %v22, %v72
  %v85 = vsub.f32 %v23, %v72
  %v86 = vsub.f32 %v24, %v72
  %v87 = vsub.f32 %v25, %v72
  %v88 = vsub.f32 %v26, %v72
  %v89 = vlaneseq
  %v90 = vshrl.u32 %v89, 7
  %v91 = vadd.s32 %v90, 8
  %v92 = vlaneseq
  %v93 = vand.u32 %v92, 127
  %vm94 = vcmp.eq.s32.totalorder %v90, %v93
  %vm95 = vcmp.eq.s32.totalorder %v91, %v93
  %v96 = vsel %vm94, 1e-06, 0.0
  %v97 = vsel %vm95, 1e-06, 0.0
  %98 = vxpose.xlu0.b32.start [1/16] %v81, 128
  %99 = vxpose.xlu0.b32.cont [2/16] %v82, 128
  %100 = vxpose.xlu0.b32.cont [3/16] %v83, 128
  %101 = vxpose.xlu0.b32.cont [4/16] %v84, 128
  %102 = vxpose.xlu0.b32.cont [5/16] %v85, 128
  %103 = vxpose.xlu0.b32.cont [6/16] %v86, 128
  %104 = vxpose.xlu0.b32.cont [7/16] %v87, 128
  %105 = vxpose.xlu0.b32.cont [8/16] %v88, 128
  %106 = vxpose.xlu0.b32.cont [9/16] 0.0, 128
  %107 = vxpose.xlu0.b32.cont [10/16] 0.0, 128
  %108 = vxpose.xlu0.b32.cont [11/16] 0.0, 128
  %109 = vxpose.xlu0.b32.cont [12/16] 0.0, 128
  %110 = vxpose.xlu0.b32.cont [13/16] 0.0, 128
  %111 = vxpose.xlu0.b32.cont [14/16] 0.0, 128
  %112 = vxpose.xlu0.b32.cont [15/16] 0.0, 128
  %113 = vxpose.xlu0.b32.end [16/16] 0.0, 128
  %v114 = vpop.trf.xlu0
  %v115 = vpop.trf.xlu0
  %v116 = vpop.trf.xlu0
  %v117 = vpop.trf.xlu0
  %v118 = vpop.trf.xlu0
  %v119 = vpop.trf.xlu0
  %v120 = vpop.trf.xlu0
  %v121 = vpop.trf.xlu0
  %v122 = vpop.trf.xlu0
  %v123 = vpop.trf.xlu0
  %v124 = vpop.trf.xlu0
  %v125 = vpop.trf.xlu0
  %v126 = vpop.trf.xlu0
  %v127 = vpop.trf.xlu0
  %v128 = vpop.trf.xlu0
  %v129 = vpop.trf.xlu0
  %vm130 = vcmask 523264
  %v132 = vsel %vm130, %v114, 0
  %v135 = vsel %vm130, %v115, 0
  %137 = vmatprep.subr.mxu0 0.0
  %138 = vmatpush1.msra.mxu0 0.0
  %139 = vmatprep.subr.mxu0 0.0
  %140 = vmatpush1.msra.mxu0 0.0
  %141 = vmatprep.subr.mxu0 0.0
  %142 = vmatpush1.msra.mxu0 0.0
  %143 = vmatprep.subr.mxu0 0.0
  %144 = vmatpush1.msra.mxu0 0.0
  %145 = vmatprep.subr.mxu0 0.0
  %146 = vmatpush1.msra.mxu0 0.0
  %147 = vmatprep.subr.mxu0 0.0
  %148 = vmatpush1.msra.mxu0 0.0
  %149 = vmatprep.subr.mxu0 0.0
  %150 = vmatpush1.msra.mxu0 0.0
  %151 = vmatprep.subr.mxu0 0.0
  %152 = vmatpush1.msra.mxu0 0.0
  %153 = vmatprep.subr.mxu0 0.0
  %154 = vmatpush1.msra.mxu0 %v88
  %155 = vmatprep.subr.mxu0 0.0
  %156 = vmatpush1.msra.mxu0 %v87
  %157 = vmatprep.subr.mxu0 0.0
  %158 = vmatpush1.msra.mxu0 %v86
  %159 = vmatprep.subr.mxu0 0.0
  %160 = vmatpush1.msra.mxu0 %v85
  %161 = vmatprep.subr.mxu0 0.0
  %162 = vmatpush1.msra.mxu0 %v84
  %163 = vmatprep.subr.mxu0 0.0
  %164 = vmatpush1.msra.mxu0 %v83
  %165 = vmatprep.subr.mxu0 0.0
  %166 = vmatpush1.msra.mxu0 %v82
  %167 = vmatprep.subr.mxu0 0.0
  %168 = vmatpush1.msra.mxu0 %v81
  %169 = vmatprep.subr.mxu0 0.0
  %170 = vmatpush2.msra.mxu0 0.0
  %171 = vmatprep.subr.mxu0 0.0
  %172 = vmatpush2.msra.mxu0 0.0
  %173 = vmatprep.subr.mxu0 0.0
  %174 = vmatpush2.msra.mxu0 0.0
  %175 = vmatprep.subr.mxu0 0.0
  %176 = vmatpush2.msra.mxu0 0.0
  %177 = vmatprep.subr.mxu0 0.0
  %178 = vmatpush2.msra.mxu0 0.0
  %179 = vmatprep.subr.mxu0 0.0
  %180 = vmatpush2.msra.mxu0 0.0
  %181 = vmatprep.subr.mxu0 0.0
  %182 = vmatpush2.msra.mxu0 0.0
  %183 = vmatprep.subr.mxu0 0.0
  %184 = vmatpush2.msra.mxu0 0.0
  %185 = vmatprep.subr.mxu0 0.0
  %186 = vmatpush2.msra.mxu0 0.0
  %187 = vmatprep.subr.mxu0 0.0
  %188 = vmatpush2.msra.mxu0 0.0
  %189 = vmatprep.subr.mxu0 0.0
  %190 = vmatpush2.msra.mxu0 0.0
  %191 = vmatprep.subr.mxu0 0.0
  %192 = vmatpush2.msra.mxu0 0.0
  %193 = vmatprep.subr.mxu0 0.0
  %194 = vmatpush2.msra.mxu0 0.0
  %195 = vmatprep.subr.mxu0 0.0
  %196 = vmatpush2.msra.mxu0 0.0
  %197 = vmatprep.subr.mxu0 0.0
  %198 = vmatpush2.msra.mxu0 0.0
  %199 = vmatprep.subr.mxu0 0.0
  %200 = vmatpush2.msra.mxu0 0.0
  %201 = vmatprep.mubr.f32.mxu0 0.0
  %202 = vmatmul.mubr.f32.gmra.mxu0 %v132
  %v203 = vpop.f32.mrf.mxu0
  %v204 = vadd.f32 0.0, %v203
  %v205 = vpop.f32.mrf.mxu0
  %206 = vmatprep.mubr.f32.mxu0 0.0
  %207 = vmatmul.mubr.f32.gmra.mxu0 %v135
  %v208 = vpop.f32.mrf.mxu0
  %v209 = vadd.f32 0.0, %v208
  %v210 = vpop.f32.mrf.mxu0
  %211 = vdwg.mxu0
  %v212 = vmul.f32 %v204, 0.015873017
  %v213 = vmul.f32 %v209, 0.015873017
  %v214 = vadd.f32 %v212, %v96
  %v215 = vadd.f32 %v213, %v97
  %v217 = vsel %vm27, %v73, 0
  %v220 = vsel %vm27, %v74, 0
  %v223 = vsel %vm27, %v75, 0
  %v226 = vsel %vm27, %v76, 0
  %v229 = vsel %vm27, %v77, 0
  %v232 = vsel %vm27, %v78, 0
  %v235 = vsel %vm27, %v79, 0
  %v238 = vsel %vm27, %v80, 0
  %240 = vmatprep.subr.mxu0 0.0
  %241 = vmatpush1.msra.mxu0 0.0
  %242 = vmatprep.subr.mxu0 0.0
  %243 = vmatpush1.msra.mxu0 0.0
  %244 = vmatprep.subr.mxu0 0.0
  %245 = vmatpush1.msra.mxu0 0.0
  %246 = vmatprep.subr.mxu0 0.0
  %247 = vmatpush1.msra.mxu0 0.0
  %248 = vmatprep.subr.mxu0 0.0
  %249 = vmatpush1.msra.mxu0 0.0
  %250 = vmatprep.subr.mxu0 0.0
  %251 = vmatpush1.msra.mxu0 0.0
  %252 = vmatprep.subr.mxu0 0.0
  %253 = vmatpush1.msra.mxu0 0.0
  %254 = vmatprep.subr.mxu0 0.0
  %255 = vmatpush1.msra.mxu0 0.0
  %256 = vmatprep.subr.mxu0 0.0
  %257 = vmatpush1.msra.mxu0 0.0
  %258 = vmatprep.subr.mxu0 0.0
  %259 = vmatpush1.msra.mxu0 0.0
  %260 = vmatprep.subr.mxu0 0.0
  %261 = vmatpush1.msra.mxu0 0.0
  %262 = vmatprep.subr.mxu0 0.0
  %263 = vmatpush1.msra.mxu0 0.0
  %264 = vmatprep.subr.mxu0 0.0
  %265 = vmatpush1.msra.mxu0 0.0
  %266 = vmatprep.subr.mxu0 0.0
  %267 = vmatpush1.msra.mxu0 0.0
  %268 = vmatprep.subr.mxu0 0.0
  %269 = vmatpush1.msra.mxu0 %v215
  %270 = vmatprep.subr.mxu0 0.0
  %271 = vmatpush1.msra.mxu0 %v214
  %272 = vmatprep.subr.mxu0 0.0
  %273 = vmatpush2.msra.mxu0 0.0
  %274 = vmatprep.subr.mxu0 0.0
  %275 = vmatpush2.msra.mxu0 0.0
  %276 = vmatprep.subr.mxu0 0.0
  %277 = vmatpush2.msra.mxu0 0.0
  %278 = vmatprep.subr.mxu0 0.0
  %279 = vmatpush2.msra.mxu0 0.0
  %280 = vmatprep.subr.mxu0 0.0
  %281 = vmatpush2.msra.mxu0 0.0
  %282 = vmatprep.subr.mxu0 0.0
  %283 = vmatpush2.msra.mxu0 0.0
  %284 = vmatprep.subr.mxu0 0.0
  %285 = vmatpush2.msra.mxu0 0.0
  %286 = vmatprep.subr.mxu0 0.0
  %287 = vmatpush2.msra.mxu0 0.0
  %288 = vmatprep.subr.mxu0 0.0
  %289 = vmatpush2.msra.mxu0 0.0
  %290 = vmatprep.subr.mxu0 0.0
  %291 = vmatpush2.msra.mxu0 0.0
  %292 = vmatprep.subr.mxu0 0.0
  %293 = vmatpush2.msra.mxu0 0.0
  %294 = vmatprep.subr.mxu0 0.0
  %295 = vmatpush2.msra.mxu0 0.0
  %296 = vmatprep.subr.mxu0 0.0
  %297 = vmatpush2.msra.mxu0 0.0
  %298 = vmatprep.subr.mxu0 0.0
  %299 = vmatpush2.msra.mxu0 0.0
  %300 = vmatprep.subr.mxu0 0.0
  %301 = vmatpush2.msra.mxu0 0.0
  %302 = vmatprep.subr.mxu0 0.0
  %303 = vmatpush2.msra.mxu0 0.0
  %304 = vmatprep.mubr.f32.mxu0 0.0
  %305 = vmatmul.mubr.f32.gmra.mxu0 %v217
  %v306 = vpop.f32.mrf.mxu0
  %v307 = vadd.f32 0.0, %v306
  %v308 = vpop.f32.mrf.mxu0
  %309 = vmatprep.mubr.f32.mxu0 0.0
  %310 = vmatmul.mubr.f32.gmra.mxu0 %v220
  %v311 = vpop.f32.mrf.mxu0
  %v312 = vadd.f32 0.0, %v311
  %v313 = vpop.f32.mrf.mxu0
  %314 = vmatprep.mubr.f32.mxu0 0.0
  %315 = vmatmul.mubr.f32.gmra.mxu0 %v223
  %v316 = vpop.f32.mrf.mxu0
  %v317 = vadd.f32 0.0, %v316
  %v318 = vpop.f32.mrf.mxu0
  %319 = vmatprep.mubr.f32.mxu0 0.0
  %320 = vmatmul.mubr.f32.gmra.mxu0 %v226
  %v321 = vpop.f32.mrf.mxu0
  %v322 = vadd.f32 0.0, %v321
  %v323 = vpop.f32.mrf.mxu0
  %324 = vmatprep.mubr.f32.mxu0 0.0
  %325 = vmatmul.mubr.f32.gmra.mxu0 %v229
  %v326 = vpop.f32.mrf.mxu0
  %v327 = vadd.f32 0.0, %v326
  %v328 = vpop.f32.mrf.mxu0
  %329 = vmatprep.mubr.f32.mxu0 0.0
  %330 = vmatmul.mubr.f32.gmra.mxu0 %v232
  %v331 = vpop.f32.mrf.mxu0
  %v332 = vadd.f32 0.0, %v331
  %v333 = vpop.f32.mrf.mxu0
  %334 = vmatprep.mubr.f32.mxu0 0.0
  %335 = vmatmul.mubr.f32.gmra.mxu0 %v235
  %v336 = vpop.f32.mrf.mxu0
  %v337 = vadd.f32 0.0, %v336
  %v338 = vpop.f32.mrf.mxu0
  %339 = vmatprep.mubr.f32.mxu0 0.0
  %340 = vmatmul.mubr.f32.gmra.mxu0 %v238
  %v341 = vpop.f32.mrf.mxu0
  %v342 = vadd.f32 0.0, %v341
  %v343 = vpop.f32.mrf.mxu0
  %344 = vdwg.mxu0
  %v345 = vadd.f32 %v72, %v307
  %v346 = vadd.f32 %v72, %v312
  %v347 = vadd.f32 %v72, %v317
  %v348 = vadd.f32 %v72, %v322
  %v349 = vadd.f32 %v72, %v327
  %v350 = vadd.f32 %v72, %v332
  %v351 = vadd.f32 %v72, %v337
  %v352 = vadd.f32 %v72, %v342
  %353 = vst.msk [vmem:[%s2] sm:$0xff] %vm27, %v345
  %354 = vst.msk [vmem:[%s2 + $0x8] sm:$0xff] %vm27, %v346
  %355 = vst.msk [vmem:[%s2 + $0x10] sm:$0xff] %vm27, %v347
  %356 = vst.msk [vmem:[%s2 + $0x18] sm:$0xff] %vm27, %v348
  %357 = vst.msk [vmem:[%s2 + $0x20] sm:$0xff] %vm27, %v349
  %358 = vst.msk [vmem:[%s2 + $0x28] sm:$0xff] %vm27, %v350
  %359 = vst.msk [vmem:[%s2 + $0x30] sm:$0xff] %vm27, %v351
  %360 = vst.msk [vmem:[%s2 + $0x38] sm:$0xff] %vm27, %v352
  // Predicated region
  $region10: #{tpu_custom_call.1} parent=0 // pred_check
    _
  $region11: #{tpu_custom_call.1} parent=0 // pred_check_branch
    %362 = sbr.rel (0) target = $region13
  $region12: #{tpu_custom_call.1} parent=0 // pred_region
    _
  $region13: #{tpu_custom_call.1} parent=0 // pred_fallthru
    _
  // Predicated region
  $region14: #{tpu_custom_call.1} parent=0 // pred_check
    _
  $region15: #{tpu_custom_call.1} parent=0 // pred_check_branch
    %364 = sbr.rel (0) target = $region17
  $region16: #{tpu_custom_call.1} parent=0 // pred_region
    _
  $region17: #{tpu_custom_call.1} parent=0 // pred_fallthru
    _

</llo_original>
